<compile_context>
chip_gen: v7x
topology: tpu7x:2x2x1
jax: 0.10.0
libtpu: 0.0.40
codegen_flags: <defaults>
</compile_context>

<pallas_src>
import jax
import jax.numpy as jnp
from jax.experimental import pallas as pl
from jax.experimental.pallas import tpu as pltpu


def _combined_kernel(x_ref, w_ref, b_ref, o_ref):
    # x_ref : (Bn, C, TC)   channel-major pixel-column tile of Bn images
    # w_ref : (4C, C)       stacked weights [W_drums; W_bass; W_other; W_vocal]
    # b_ref : (4C, 1)       stacked biases
    # o_ref : (Bn, 4C, TC)  concatenated output tile (channel concat is free)
    y = jnp.einsum(
        "oc,bct->bot", w_ref[...], x_ref[...],
        preferred_element_type=jnp.float32,
    )
    y = y + b_ref[...][None]                       # (1, 4C, 1) broadcast
    o_ref[...] = jnp.maximum(y, 0.0).astype(o_ref.dtype)


def _vmem_capacity_bytes():
    try:
        return int(pltpu.get_tpu_info().vmem_capacity_bytes)
    except Exception:
        return 64 << 20  # conservative: v7x has 64 MiB per TensorCore


def _round_down_128(v):
    return max(128, (v // 128) * 128)


def _round_up_128(v):
    return max(128, ((v + 127) // 128) * 128)


def _pick_tiling(N, C, M, vmem_cap):
    """Pick (Bn, n_batch, tc, n_col) for grid=(n_batch, n_col)."""
    C4 = 4 * C
    # Bytes of VMEM needed per pixel-column per image per grid step:
    # double-buffered f32 input (2*C) + double-buffered f32 output (2*4C)
    # + one f32 pre-ReLU matmul temp (4C).
    per_col = (2 * C + 3 * C4) * 4
    w_bytes = (C4 * C + C4) * 4                     # resident weights + bias
    budget = max(4 << 20, vmem_cap // 3 - w_bytes)

    # Lane-aligned pixel tile, as large as the budget (and M) allows.
    tc_full = _round_up_128(M)
    tc = min(tc_full, _round_down_128(budget // per_col))
    n_col = pl.cdiv(M, tc)

    # Batch-block small images until each step moves ~8 MiB (enough to
    # amortize the ~0.35 us/step overhead on every generation's HBM).
    target = 8 << 20
    Bn = 1
    while (Bn < N
           and (Bn + 1) * per_col * tc <= budget
           and Bn * per_col * tc < target):
        Bn += 1
    n_batch = pl.cdiv(N, Bn)

    # Megacore: ensure >=2 parallel grid steps whenever the problem allows it.
    if n_batch * n_col < 2:
        if N >= 2:
            Bn = (N + 1) // 2
            n_batch = pl.cdiv(N, Bn)
        elif tc >= 256:
            tc = _round_up_128(pl.cdiv(M, 2))
            n_col = pl.cdiv(M, tc)
    return Bn, n_batch, tc, n_col


def combined_model_forward(x_nchw, weights, biases):
    """Runs the 4 stem models + channel concat.

    x_nchw  : (N, C, H, W) float32
    weights : list of 4 arrays, each (C_out, C_in) = (C, C)   (Conv2d 1x1)
    biases  : list of 4 arrays, each (C,)
    returns : (N, 4*C, H, W) float32  == torch.cat([m(x) for m in models], dim=1)
    """
    N, C, H, W = x_nchw.shape
    C4 = 4 * C

    # Stack the four (C_out, C_in) matrices along the output-channel axis:
    # W_stack @ x is exactly the channel concat of the four projections.
    w_all = jnp.concatenate(weights, axis=0)                   # (4C, C)
    b_all = jnp.concatenate(biases, axis=0).reshape(C4, 1)     # (4C, 1)

    # Channel-major, transpose-free layout: (N, C, H*W).  The big pixel axis
    # is the lane (fast) axis, so loads and stores are lane-dense.
    M = H * W
    x_cm = x_nchw.reshape(N, C, M)

    vmem_cap = _vmem_capacity_bytes()
    Bn, n_batch, tc, n_col = _pick_tiling(N, C, M, vmem_cap)
    vmem_limit = (40 << 20) if vmem_cap <= (64 << 20) else (96 << 20)

    cost = pl.CostEstimate(
        flops=2 * N * M * C4 * C,
        transcendentals=0,
        bytes_accessed=(N * C * M + N * C4 * M + C4 * C + C4) * 4,
    )

    out_cm = pl.pallas_call(
        _combined_kernel,
        out_shape=jax.ShapeDtypeStruct((N, C4, M), jnp.float32),
        grid_spec=pltpu.PrefetchScalarGridSpec(
            num_scalar_prefetch=0,
            grid=(n_batch, n_col),
            in_specs=[
                pl.BlockSpec((Bn, C, tc), lambda b, j: (b, 0, j)),
                pl.BlockSpec((C4, C), lambda b, j: (0, 0)),   # resident weights
                pl.BlockSpec((C4, 1), lambda b, j: (0, 0)),   # resident bias
            ],
            out_specs=pl.BlockSpec((Bn, C4, tc), lambda b, j: (b, 0, j)),
        ),
        compiler_params=pltpu.CompilerParams(
            dimension_semantics=("parallel", "parallel"),
            vmem_limit_bytes=vmem_limit,
        ),
        cost_estimate=cost,
    )(x_cm, w_all, b_all)

    return out_cm.reshape(N, C4, H, W)


def _reference(x_nchw, weights, biases):
    # Pure-JAX reference: per-model 1x1 conv + ReLU, concat along dim=1.
    outs = []
    for w, b in zip(weights, biases):
        y = jnp.einsum("nchw,oc->nohw", x_nchw, w) + b[None, :, None, None]
        outs.append(jnp.maximum(y, 0.0))
    return jnp.concatenate(outs, axis=1)


if __name__ == "__main__":
    key = jax.random.PRNGKey(0)
    N, C, H, Wd = 2, 4, 16, 16

    kx, *kws = jax.random.split(key, 1 + 8)
    x = jax.random.normal(kx, (N, C, H, Wd), dtype=jnp.float32)

    # Deterministic synthetic parameters for the 4 stem models.
    weights = [0.1 * jax.random.normal(kws[2 * i], (C, C), dtype=jnp.float32)
               for i in range(4)]
    biases = [0.01 * jax.random.normal(kws[2 * i + 1], (C,), dtype=jnp.float32)
              for i in range(4)]

    out = combined_model_forward(x, weights, biases)
    out = jax.block_until_ready(out)

    ref = _reference(x, weights, biases)
    assert out.shape == (N, 4 * C, H, Wd), out.shape
    assert jnp.allclose(out, ref, atol=1e-5, rtol=1e-5), "mismatch vs reference"

    print("KERNEL_OK")
</pallas_src>

<mosaic_0001>
module attributes {stable_mosaic.version = 11 : i64} {
  func.func @_combined_kernel(%arg0: i32, %arg1: i32, %arg2: memref<1x4x256xf32, #tpu.memory_space<vmem>>, %arg3: memref<16x4xf32, #tpu.memory_space<vmem>>, %arg4: memref<16x1xf32, #tpu.memory_space<vmem>>, %arg5: memref<1x16x256xf32, #tpu.memory_space<vmem>>) attributes {dimension_semantics = [#tpu.dimension_semantics<parallel>, #tpu.dimension_semantics<parallel>], iteration_bounds = array<i64: 2, 1>, scalar_prefetch = 0 : i64, scratch_operands = 0 : i64, tpu.core_type = #tpu.core_type<tc>, window_params = [{transform_indices = @transform_0, window_bounds = array<i64: 1, 4, 256>}, {pipeline_mode = #tpu.pipeline_mode<synchronous>, transform_indices = @transform_1, window_bounds = array<i64: 16, 4>}, {pipeline_mode = #tpu.pipeline_mode<synchronous>, transform_indices = @transform_2, window_bounds = array<i64: 16, 1>}, {transform_indices = @transform_3, window_bounds = array<i64: 1, 16, 256>}]} {
    %c0 = arith.constant 0 : index
    %c0_0 = arith.constant 0 : index
    %0 = vector.load %arg3[%c0, %c0_0] : memref<16x4xf32, #tpu.memory_space<vmem>>, vector<16x4xf32>
    %c0_1 = arith.constant 0 : index
    %c0_2 = arith.constant 0 : index
    %c0_3 = arith.constant 0 : index
    %1 = vector.load %arg2[%c0_1, %c0_2, %c0_3] : memref<1x4x256xf32, #tpu.memory_space<vmem>>, vector<1x4x256xf32>
    "tpu.trace_start"() <{level = 10 : i32, message = "oc,bct->bot"}> : () -> ()
    %cst = arith.constant dense<0.000000e+00> : vector<1x256x16xf32>
    %2 = tpu.matmul %1, %0, %cst {dimension_numbers = #tpu.dot_dimension_numbers<[1], [1], [0, 2], [0], [0, 0, 0, 2, 1, 0], [], []>} : vector<1x4x256xf32>, vector<16x4xf32>, vector<1x256x16xf32> -> vector<1x256x16xf32>
    %3 = tpu.transpose %2, [0, 2, 1] : vector<1x256x16xf32> -> vector<1x16x256xf32>
    "tpu.trace_stop"() : () -> ()
    %c0_4 = arith.constant 0 : index
    %c0_5 = arith.constant 0 : index
    %4 = vector.load %arg4[%c0_4, %c0_5] : memref<16x1xf32, #tpu.memory_space<vmem>>, vector<16x1xf32>
    %5 = vector.shape_cast %4 : vector<16x1xf32> to vector<1x16x1xf32>
    %6 = vector.broadcast %5 : vector<1x16x1xf32> to vector<1x16x256xf32>
    %7 = arith.addf %3, %6 : vector<1x16x256xf32>
    %cst_6 = arith.constant 0.000000e+00 : f32
    %8 = vector.broadcast %cst_6 : f32 to vector<1x16x256xf32>
    %9 = arith.maximumf %7, %8 : vector<1x16x256xf32>
    %c0_7 = arith.constant 0 : index
    %c0_8 = arith.constant 0 : index
    %c0_9 = arith.constant 0 : index
    %10 = vector.load %arg5[%c0_7, %c0_8, %c0_9] : memref<1x16x256xf32, #tpu.memory_space<vmem>>, vector<1x16x256xf32>
    tpu.vector_store %arg5[%c0_7, %c0_8, %c0_9], %9 {strides = array<i32>} : memref<1x16x256xf32, #tpu.memory_space<vmem>>, vector<1x16x256xf32>,
    return
  }
  func.func @transform_0(%arg0: i32, %arg1: i32) -> (i32, i32, i32) {
    %c0_i32 = arith.constant 0 : i32
    %c0_i32_0 = arith.constant 0 : i32
    return %arg0, %c0_i32, %arg1 : i32, i32, i32
  }
  func.func @transform_1(%arg0: i32, %arg1: i32) -> (i32, i32) {
    %c0_i32 = arith.constant 0 : i32
    %c0_i32_0 = arith.constant 0 : i32
    %c0_i32_1 = arith.constant 0 : i32
    return %c0_i32, %c0_i32_0 : i32, i32
  }
  func.func @transform_2(%arg0: i32, %arg1: i32) -> (i32, i32) {
    %c0_i32 = arith.constant 0 : i32
    %c0_i32_0 = arith.constant 0 : i32
    %c0_i32_1 = arith.constant 0 : i32
    return %c0_i32, %c0_i32_0 : i32, i32
  }
  func.func @transform_3(%arg0: i32, %arg1: i32) -> (i32, i32, i32) {
    %c0_i32 = arith.constant 0 : i32
    %c0_i32_0 = arith.constant 0 : i32
    return %arg0, %c0_i32, %arg1 : i32, i32, i32
  }
}

</mosaic_0001>

<llo_original>
// kernel: tpu_custom_call.1
$region0: #{tpu_custom_call.1}
  #allocation0 [shape = 'u32[]', space=smem, size = 0x4, offset = 0x4, fixed_abs, tag = 'smem constant byte address 0x4 - core index']
  #allocation1 [shape = 'u32[144,128]{1,0:T(1,128)}', space=vmem, size = 0x12000, scoped, tag = 'internal scratch']
  %s0 = inlined_call_operand.vmem [shape: f32[2,4,256], index: 0, kind: input, shape index: {}]
  %s1 = inlined_call_operand.vmem [shape: f32[16,4], index: 1, kind: input, shape index: {}]
  %s2 = inlined_call_operand.vmem [shape: f32[16,1], index: 2, kind: input, shape index: {}]
  %s3 = inlined_call_operand.hbm [shape: f32[2,16,256], index: 3, kind: output, shape index: {}]
  %s4 = sld [smem:[#allocation0]]
  $region45: #{tpu_custom_call.1} parent=0
    _
  %s6 = ssub.s32 1, %s4
  %s7 = scalar_select 0, %s6, %s4
  $region1: #{tpu_custom_call.1} parent=0
    #allocation2 [shape = 'u8[32768]{0}', space=vmem, size = 0x8000, scoped, tag = 'output window, operand 0']
    #allocation3 [shape = 's32[2]{0}', space=sflag, size = 0x8, scoped, tag = 'scoped memory for tpu_custom_call.1']
    %8 = vsyncpa [#allocation3], 0
    %s9 = scalar_lea.sflag [#allocation3], 1
    %10 = vsyncpa %s9, 0
    loop: start=0, step=1, limit=4
    $region2: #{tpu_custom_call.1} parent=1 // loop_pre_header
      _
    $region3: #{tpu_custom_call.1} parent=1 // loop_header
      %s12 = sphi 0, %s16
      %p13 = scmp.ge.s32.totalorder %s12, 4
      %s19 = sphi 0, %s31
      %s20 = sphi 0, %s27
      %s21 = sphi 0, %s19
      %s22 = sphi 0, %s20
      %s23 = sphi 0, %s21
      %s24 = sphi 0, %s22
      %s36 = sphi 0, %s38
      %s39 = sphi 0, %s36
      %s40 = sphi 0, %s39
      %s56 = sphi 0, %s40
      %s60 = sphi 0, %s60
      %s62 = sphi 0, %s60
      %s63 = sphi 0, %s62
      %s77 = sphi 0, %s63
      %s81 = sphi 0, %s81
      %s83 = sphi 0, %s81
      %s84 = sphi 0, %s83
      %s98 = sphi 0, %s84
      %s106 = sphi 0, %s108
      %s109 = sphi 0, %s106
      %s110 = sphi 0, %s109
      %s126 = sphi 0, %s110
    $region4: #{tpu_custom_call.1} parent=1 // loop_header_branch
      %15 = sbr.rel (%p13) target = $region8
    $region5: #{tpu_custom_call.1} parent=1 // loop_body
      %s17 = ssub.s32 %s12, 1
      %s18 = ssub.s32 %s12, 2
      %s25 = sadd.s32 1, %s20
      %p26 = scmp.ge.s32.totalorder %s25, 1
      %s27 = scalar_select %p26, 0, %s25
      %s28 = sadd.s32 1, %s19
      %s29 = scalar_select %p26, %s28, %s19
      %p30 = scmp.ge.s32.totalorder %s29, 2
      %s31 = scalar_select %p30, 0, %s29
      %s32 = ssub.s32 %s19, %s31
      %s33 = ssub.s32 %s20, %s27
      %s34 = sor.u32 %s32, %s33
      %p35 = scmp.eq.s32.totalorder %s34, 0
      %s37 = sadd.s32 %s36, 1
      %s38 = scalar_select %p35, %s36, %s37
      %p41 = pneg %p35
      %p42 = scmp.eq.s32.totalorder %s12, 1
      %p43 = por %p41, %p42
      %p44 = scmp.ne.s32.totalorder %s36, %s39
      %p45 = scmp.eq.s32.totalorder %s12, 0
      %p46 = por %p44, %p45
      %p47 = scmp.ne.s32.totalorder %s36, %s39
      %p48 = scmp.eq.s32.totalorder %s17, 1
      %p49 = por %p47, %p48
      %p50 = scmp.ne.s32.totalorder %s39, %s40
      %p51 = scmp.eq.s32.totalorder %s17, 0
      %p52 = por %p50, %p51
      %p53 = scmp.ne.s32.totalorder %s39, %s40
      %p54 = scmp.eq.s32.totalorder %s18, 1
      %p55 = por %p53, %p54
      %p57 = scmp.ne.s32.totalorder %s40, %s56
      %p58 = scmp.eq.s32.totalorder %s18, 0
      %p59 = por %p57, %p58
      %s61 = sadd.s32 %s60, 1
      %p64 = scmp.eq.s32.totalorder %s12, 1
      %p65 = scmp.ne.s32.totalorder %s60, %s62
      %p66 = scmp.eq.s32.totalorder %s12, 0
      %p67 = por %p65, %p66
      %p68 = scmp.ne.s32.totalorder %s60, %s62
      %p69 = scmp.eq.s32.totalorder %s17, 1
      %p70 = por %p68, %p69
      %p71 = scmp.ne.s32.totalorder %s62, %s63
      %p72 = scmp.eq.s32.totalorder %s17, 0
      %p73 = por %p71, %p72
      %p74 = scmp.ne.s32.totalorder %s62, %s63
      %p75 = scmp.eq.s32.totalorder %s18, 1
      %p76 = por %p74, %p75
      %p78 = scmp.ne.s32.totalorder %s63, %s77
      %p79 = scmp.eq.s32.totalorder %s18, 0
      %p80 = por %p78, %p79
      %s82 = sadd.s32 %s81, 1
      %p85 = scmp.eq.s32.totalorder %s12, 1
      %p86 = scmp.ne.s32.totalorder %s81, %s83
      %p87 = scmp.eq.s32.totalorder %s12, 0
      %p88 = por %p86, %p87
      %p89 = scmp.ne.s32.totalorder %s81, %s83
      %p90 = scmp.eq.s32.totalorder %s17, 1
      %p91 = por %p89, %p90
      %p92 = scmp.ne.s32.totalorder %s83, %s84
      %p93 = scmp.eq.s32.totalorder %s17, 0
      %p94 = por %p92, %p93
      %p95 = scmp.ne.s32.totalorder %s83, %s84
      %p96 = scmp.eq.s32.totalorder %s18, 1
      %p97 = por %p95, %p96
      %p99 = scmp.ne.s32.totalorder %s84, %s98
      %p100 = scmp.eq.s32.totalorder %s18, 0
      %p101 = por %p99, %p100
      %s102 = ssub.s32 %s19, %s31
      %s103 = ssub.s32 %s20, %s27
      %s104 = sor.u32 %s102, %s103
      %p105 = scmp.eq.s32.totalorder %s104, 0
      %s107 = sadd.s32 %s106, 1
      %s108 = scalar_select %p105, %s106, %s107
      %p111 = pneg %p105
      %p112 = scmp.eq.s32.totalorder %s12, 1
      %p113 = por %p111, %p112
      %p114 = scmp.ne.s32.totalorder %s106, %s109
      %p115 = scmp.eq.s32.totalorder %s12, 0
      %p116 = por %p114, %p115
      %p117 = scmp.ne.s32.totalorder %s106, %s109
      %p118 = scmp.eq.s32.totalorder %s17, 1
      %p119 = por %p117, %p118
      %p120 = scmp.ne.s32.totalorder %s109, %s110
      %p121 = scmp.eq.s32.totalorder %s17, 0
      %p122 = por %p120, %p121
      %p123 = scmp.ne.s32.totalorder %s109, %s110
      %p124 = scmp.eq.s32.totalorder %s18, 1
      %p125 = por %p123, %p124
      %p127 = scmp.ne.s32.totalorder %s110, %s126
      %p128 = scmp.eq.s32.totalorder %s18, 0
      %p129 = por %p127, %p128
      %p130 = scmp.le.s32.totalorder 1, %s12
      %p131 = scmp.lt.s32.totalorder %s12, 3
      %p132 = pnand %p130, %p131
      %p133 = pneg %p132
      // Predicated region
      $region9: #{tpu_custom_call.1} parent=5 // pred_check
        _
      $region10: #{tpu_custom_call.1} parent=5 // pred_check_branch
        %135 = sbr.rel (%p132) target = $region12
      $region11: #{tpu_custom_call.1} parent=5 // pred_region
        %s136 = ssub.s32 %s12, 1
        // Predicated region
        $region13: #{tpu_custom_call.1} parent=11 // pred_check
          %p137 = pneg %p73
        $region14: #{tpu_custom_call.1} parent=11 // pred_check_branch
          %139 = sbr.rel (%p137) target = $region16
        $region15: #{tpu_custom_call.1} parent=11 // pred_region
          _
        $region16: #{tpu_custom_call.1} parent=11 // pred_fallthru
          _
        // Predicated region
        $region17: #{tpu_custom_call.1} parent=11 // pred_check
          %p140 = pneg %p94
        $region18: #{tpu_custom_call.1} parent=11 // pred_check_branch
          %142 = sbr.rel (%p140) target = $region20
        $region19: #{tpu_custom_call.1} parent=11 // pred_region
          _
        $region20: #{tpu_custom_call.1} parent=11 // pred_fallthru
          _
      $region12: #{tpu_custom_call.1} parent=5 // pred_fallthru
        _
      %p143 = scmp.lt.s32.totalorder %s12, 2
      // Predicated region
      $region21: #{tpu_custom_call.1} parent=5 // pred_check
        %p144 = pneg %p143
      $region22: #{tpu_custom_call.1} parent=5 // pred_check_branch
        %146 = sbr.rel (%p144) target = $region24
      $region23: #{tpu_custom_call.1} parent=5 // pred_region
        // Predicated region
        $region25: #{tpu_custom_call.1} parent=23 // pred_check
          %p147 = pneg %p46
        $region26: #{tpu_custom_call.1} parent=23 // pred_check_branch
          %149 = sbr.rel (%p147) target = $region28
        $region27: #{tpu_custom_call.1} parent=23 // pred_region
          %s150 = smul.u32 2, %s20
          %p151 = scmp.lt.s32.totalorder %s19, 1
          %s152 = scalar_select %p151, %s19, 1
          %p153 = scmp.lt.s32.totalorder %s150, 1
          %s154 = scalar_select %p153, %s150, 1
          %s155 = smul.addr %s152, 2
          %s156 = sadd.s32 %s154, %s155
          %s157 = smul.addr %s156, 4
          %s158 = scalar_lea.vmem %s0, %s157
          %s159 = smul.u32 2, %s20
        $region28: #{tpu_custom_call.1} parent=23 // pred_fallthru
          _
      $region24: #{tpu_custom_call.1} parent=5 // pred_fallthru
        _
      %p160 = scmp.le.s32.totalorder 1, %s12
      %p161 = scmp.lt.s32.totalorder %s12, 3
      %p162 = pnand %p160, %p161
      %p163 = pneg %p162
      // Predicated region
      $region29: #{tpu_custom_call.1} parent=5 // pred_check
        _
      $region30: #{tpu_custom_call.1} parent=5 // pred_check_branch
        %165 = sbr.rel (%p162) target = $region32
      $region31: #{tpu_custom_call.1} parent=5 // pred_region
        %s166 = ssub.s32 %s12, 1
        %s167 = smul.u32 2, %s22
        %p168 = scmp.lt.s32.totalorder %s21, 1
        %s169 = scalar_select %p168, %s21, 1
        %p170 = scmp.lt.s32.totalorder %s167, 1
        %s171 = scalar_select %p170, %s167, 1
        %s172 = smul.addr %s169, 2
        %s173 = sadd.s32 %s171, %s172
        %s174 = smul.addr %s173, 4
        %s175 = scalar_lea.vmem %s0, %s174
        %p176 = pneg %p52
        %p177 = pneg %p49
        %p178 = pneg %p73
        %p179 = pneg %p70
        %p180 = pneg %p94
        %p181 = pneg %p91
        %p182 = pneg %p122
        %p183 = pneg %p119
        %s184 = sand.u32 %s109, 1
        %s185 = scalar_lea.sflag [#allocation3], %s184
        %s186 = sand.u32 %s109, 1
        %s187 = smul.addr %s186, 32
        %s188 = scalar_lea.vmem [#allocation2], %s187
        %s189 = smul.u32 2, %s22
        %p190 = scmp.lt.s32.totalorder %s21, 1
        %s191 = scalar_select %p190, %s21, 1
        %p192 = scmp.lt.s32.totalorder %s189, 1
        %s193 = scalar_select %p192, %s189, 1
        %s194 = smul.addr %s191, 2
        %s195 = sadd.s32 %s193, %s194
        %s196 = smul.addr %s195, 4
        %s197 = scalar_lea.vmem %s0, %s196
        %s198 = smul.u32 2, %s22
        %s199 = smul.u32 2, %s22
        %v200 = vld [vmem:[%s1] sm:$0xff]
        %v201 = vld [vmem:[%s1 + $0x8] sm:$0xff]
        %v202 = vld [vmem:[%s197] sm:$0xff]
        %v204 = vcombine.high %v202, %v202
        %206 = vxpose.xlu0.b32.start [1/16] %v202, 128
        %207 = vxpose.xlu0.b32.cont [2/16] 0.0, 128
        %208 = vxpose.xlu0.b32.cont [3/16] 0.0, 128
        %209 = vxpose.xlu0.b32.cont [4/16] 0.0, 128
        %210 = vxpose.xlu0.b32.cont [5/16] 0.0, 128
        %211 = vxpose.xlu0.b32.cont [6/16] 0.0, 128
        %212 = vxpose.xlu0.b32.cont [7/16] 0.0, 128
        %213 = vxpose.xlu0.b32.cont [8/16] 0.0, 128
        %214 = vxpose.xlu0.b32.cont [9/16] 0.0, 128
        %215 = vxpose.xlu0.b32.cont [10/16] 0.0, 128
        %216 = vxpose.xlu0.b32.cont [11/16] 0.0, 128
        %217 = vxpose.xlu0.b32.cont [12/16] 0.0, 128
        %218 = vxpose.xlu0.b32.cont [13/16] 0.0, 128
        %219 = vxpose.xlu0.b32.cont [14/16] 0.0, 128
        %220 = vxpose.xlu0.b32.cont [15/16] 0.0, 128
        %221 = vxpose.xlu0.b32.end [16/16] 0.0, 128
        %v222 = vpop.trf.xlu0
        %v223 = vpop.trf.xlu0
        %v224 = vpop.trf.xlu0
        %v225 = vpop.trf.xlu0
        %v226 = vpop.trf.xlu0
        %v227 = vpop.trf.xlu0
        %v228 = vpop.trf.xlu0
        %v229 = vpop.trf.xlu0
        %v230 = vpop.trf.xlu0
        %v231 = vpop.trf.xlu0
        %v232 = vpop.trf.xlu0
        %v233 = vpop.trf.xlu0
        %v234 = vpop.trf.xlu0
        %v235 = vpop.trf.xlu0
        %v236 = vpop.trf.xlu0
        %v237 = vpop.trf.xlu0
        %238 = vxpose.xlu0.b32.start [1/16] %v204, 128
        %239 = vxpose.xlu0.b32.cont [2/16] 0.0, 128
        %240 = vxpose.xlu0.b32.cont [3/16] 0.0, 128
        %241 = vxpose.xlu0.b32.cont [4/16] 0.0, 128
        %242 = vxpose.xlu0.b32.cont [5/16] 0.0, 128
        %243 = vxpose.xlu0.b32.cont [6/16] 0.0, 128
        %244 = vxpose.xlu0.b32.cont [7/16] 0.0, 128
        %245 = vxpose.xlu0.b32.cont [8/16] 0.0, 128
        %246 = vxpose.xlu0.b32.cont [9/16] 0.0, 128
        %247 = vxpose.xlu0.b32.cont [10/16] 0.0, 128
        %248 = vxpose.xlu0.b32.cont [11/16] 0.0, 128
        %249 = vxpose.xlu0.b32.cont [12/16] 0.0, 128
        %250 = vxpose.xlu0.b32.cont [13/16] 0.0, 128
        %251 = vxpose.xlu0.b32.cont [14/16] 0.0, 128
        %252 = vxpose.xlu0.b32.cont [15/16] 0.0, 128
        %253 = vxpose.xlu0.b32.end [16/16] 0.0, 128
        %v254 = vpop.trf.xlu0
        %v255 = vpop.trf.xlu0
        %v256 = vpop.trf.xlu0
        %v257 = vpop.trf.xlu0
        %v258 = vpop.trf.xlu0
        %v259 = vpop.trf.xlu0
        %v260 = vpop.trf.xlu0
        %v261 = vpop.trf.xlu0
        %v262 = vpop.trf.xlu0
        %v263 = vpop.trf.xlu0
        %v264 = vpop.trf.xlu0
        %v265 = vpop.trf.xlu0
        %v266 = vpop.trf.xlu0
        %v267 = vpop.trf.xlu0
        %v268 = vpop.trf.xlu0
        %v269 = vpop.trf.xlu0
        %vm270 = vcmask 31744
        %v272 = vsel %vm270, %v222, 0
        %v275 = vsel %vm270, %v223, 0
        %v278 = vsel %vm270, %v224, 0
        %v281 = vsel %vm270, %v225, 0
        %v284 = vsel %vm270, %v226, 0
        %v287 = vsel %vm270, %v227, 0
        %v290 = vsel %vm270, %v228, 0
        %v293 = vsel %vm270, %v229, 0
        %v296 = vsel %vm270, %v230, 0
        %v299 = vsel %vm270, %v231, 0
        %v302 = vsel %vm270, %v232, 0
        %v305 = vsel %vm270, %v233, 0
        %v308 = vsel %vm270, %v234, 0
        %v311 = vsel %vm270, %v235, 0
        %v314 = vsel %vm270, %v236, 0
        %v317 = vsel %vm270, %v237, 0
        %v320 = vsel %vm270, %v254, 0
        %v323 = vsel %vm270, %v255, 0
        %v326 = vsel %vm270, %v256, 0
        %v329 = vsel %vm270, %v257, 0
        %v332 = vsel %vm270, %v258, 0
        %v335 = vsel %vm270, %v259, 0
        %v338 = vsel %vm270, %v260, 0
        %v341 = vsel %vm270, %v261, 0
        %v344 = vsel %vm270, %v262, 0
        %v347 = vsel %vm270, %v263, 0
        %v350 = vsel %vm270, %v264, 0
        %v353 = vsel %vm270, %v265, 0
        %v356 = vsel %vm270, %v266, 0
        %v359 = vsel %vm270, %v267, 0
        %v362 = vsel %vm270, %v268, 0
        %v365 = vsel %vm270, %v269, 0
        %v368 = vsel %vm270, %v200, 0
        %v371 = vsel %vm270, %v201, 0
        %373 = vmatprep.subr.mxu0 0.0
        %374 = vmatpush1.xpose.msra.mxu0 %v368
        %375 = vmatprep.subr.mxu0 0.0
        %376 = vmatpush1.xpose.msra.mxu0 %v371
        %377 = vmatprep.subr.mxu0 0.0
        %378 = vmatpush1.xpose.msra.mxu0 0.0
        %379 = vmatprep.subr.mxu0 0.0
        %380 = vmatpush1.xpose.msra.mxu0 0.0
        %381 = vmatprep.subr.mxu0 0.0
        %382 = vmatpush1.xpose.msra.mxu0 0.0
        %383 = vmatprep.subr.mxu0 0.0
        %384 = vmatpush1.xpose.msra.mxu0 0.0
        %385 = vmatprep.subr.mxu0 0.0
        %386 = vmatpush1.xpose.msra.mxu0 0.0
        %387 = vmatprep.subr.mxu0 0.0
        %388 = vmatpush1.xpose.msra.mxu0 0.0
        %389 = vmatprep.subr.mxu0 0.0
        %390 = vmatpush1.xpose.msra.mxu0 0.0
        %391 = vmatprep.subr.mxu0 0.0
        %392 = vmatpush1.xpose.msra.mxu0 0.0
        %393 = vmatprep.subr.mxu0 0.0
        %394 = vmatpush1.xpose.msra.mxu0 0.0
        %395 = vmatprep.subr.mxu0 0.0
        %396 = vmatpush1.xpose.msra.mxu0 0.0
        %397 = vmatprep.subr.mxu0 0.0
        %398 = vmatpush1.xpose.msra.mxu0 0.0
        %399 = vmatprep.subr.mxu0 0.0
        %400 = vmatpush1.xpose.msra.mxu0 0.0
        %401 = vmatprep.subr.mxu0 0.0
        %402 = vmatpush1.xpose.msra.mxu0 0.0
        %403 = vmatprep.subr.mxu0 0.0
        %404 = vmatpush1.xpose.msra.mxu0 0.0
        %405 = vmatprep.subr.mxu0 0.0
        %406 = vmatpush1.xpose.msra.mxu0 0.0
        %407 = vmatprep.subr.mxu0 0.0
        %408 = vmatpush1.xpose.msra.mxu0 0.0
        %409 = vmatprep.subr.mxu0 0.0
        %410 = vmatpush1.xpose.msra.mxu0 0.0
        %411 = vmatprep.subr.mxu0 0.0
        %412 = vmatpush1.xpose.msra.mxu0 0.0
        %413 = vmatprep.subr.mxu0 0.0
        %414 = vmatpush1.xpose.msra.mxu0 0.0
        %415 = vmatprep.subr.mxu0 0.0
        %416 = vmatpush1.xpose.msra.mxu0 0.0
        %417 = vmatprep.subr.mxu0 0.0
        %418 = vmatpush1.xpose.msra.mxu0 0.0
        %419 = vmatprep.subr.mxu0 0.0
        %420 = vmatpush1.xpose.msra.mxu0 0.0
        %421 = vmatprep.subr.mxu0 0.0
        %422 = vmatpush1.xpose.msra.mxu0 0.0
        %423 = vmatprep.subr.mxu0 0.0
        %424 = vmatpush1.xpose.msra.mxu0 0.0
        %425 = vmatprep.subr.mxu0 0.0
        %426 = vmatpush1.xpose.msra.mxu0 0.0
        %427 = vmatprep.subr.mxu0 0.0
        %428 = vmatpush1.xpose.msra.mxu0 0.0
        %429 = vmatprep.subr.mxu0 0.0
        %430 = vmatpush1.xpose.msra.mxu0 0.0
        %431 = vmatprep.subr.mxu0 0.0
        %432 = vmatpush1.xpose.msra.mxu0 0.0
        %433 = vmatprep.subr.mxu0 0.0
        %434 = vmatpush1.xpose.msra.mxu0 0.0
        %435 = vmatprep.subr.mxu0 0.0
        %436 = vmatpush1.xpose.msra.mxu0 0.0
        %437 = vmatprep.mubr.f32.mxu0 0.0
        %438 = vmatmul.mubr.f32.gmra.mrb[0].mxu0 %v272
        %v439 = vpop.f32.mrb[0].mxu0
        %v440 = vadd.f32 0.0, %v439
        %v441 = vpop.f32.mrb[0].mxu0
        %442 = vmatprep.mubr.f32.mxu0 0.0
        %443 = vmatmul.mubr.f32.gmra.mrb[0].mxu0 %v275
        %v444 = vpop.f32.mrb[0].mxu0
        %v445 = vadd.f32 0.0, %v444
        %v446 = vpop.f32.mrb[0].mxu0
        %447 = vmatprep.mubr.f32.mxu0 0.0
        %448 = vmatmul.mubr.f32.gmra.mrb[0].mxu0 %v278
        %v449 = vpop.f32.mrb[0].mxu0
        %v450 = vadd.f32 0.0, %v449
        %v451 = vpop.f32.mrb[0].mxu0
        %452 = vmatprep.mubr.f32.mxu0 0.0
        %453 = vmatmul.mubr.f32.gmra.mrb[0].mxu0 %v281
        %v454 = vpop.f32.mrb[0].mxu0
        %v455 = vadd.f32 0.0, %v454
        %v456 = vpop.f32.mrb[0].mxu0
        %457 = vmatprep.mubr.f32.mxu0 0.0
        %458 = vmatmul.mubr.f32.gmra.mrb[0].mxu0 %v284
        %v459 = vpop.f32.mrb[0].mxu0
        %v460 = vadd.f32 0.0, %v459
        %v461 = vpop.f32.mrb[0].mxu0
        %462 = vmatprep.mubr.f32.mxu0 0.0
        %463 = vmatmul.mubr.f32.gmra.mrb[0].mxu0 %v287
        %v464 = vpop.f32.mrb[0].mxu0
        %v465 = vadd.f32 0.0, %v464
        %v466 = vpop.f32.mrb[0].mxu0
        %467 = vmatprep.mubr.f32.mxu0 0.0
        %468 = vmatmul.mubr.f32.gmra.mrb[0].mxu0 %v290
        %v469 = vpop.f32.mrb[0].mxu0
        %v470 = vadd.f32 0.0, %v469
        %v471 = vpop.f32.mrb[0].mxu0
        %472 = vmatprep.mubr.f32.mxu0 0.0
        %473 = vmatmul.mubr.f32.gmra.mrb[0].mxu0 %v293
        %v474 = vpop.f32.mrb[0].mxu0
        %v475 = vadd.f32 0.0, %v474
        %v476 = vpop.f32.mrb[0].mxu0
        %477 = vmatprep.mubr.f32.mxu0 0.0
        %478 = vmatmul.mubr.f32.gmra.mrb[0].mxu0 %v296
        %v479 = vpop.f32.mrb[0].mxu0
        %v480 = vadd.f32 0.0, %v479
        %v481 = vpop.f32.mrb[0].mxu0
        %482 = vmatprep.mubr.f32.mxu0 0.0
        %483 = vmatmul.mubr.f32.gmra.mrb[0].mxu0 %v299
        %v484 = vpop.f32.mrb[0].mxu0
        %v485 = vadd.f32 0.0, %v484
        %v486 = vpop.f32.mrb[0].mxu0
        %487 = vmatprep.mubr.f32.mxu0 0.0
        %488 = vmatmul.mubr.f32.gmra.mrb[0].mxu0 %v302
        %v489 = vpop.f32.mrb[0].mxu0
        %v490 = vadd.f32 0.0, %v489
        %v491 = vpop.f32.mrb[0].mxu0
        %492 = vmatprep.mubr.f32.mxu0 0.0
        %493 = vmatmul.mubr.f32.gmra.mrb[0].mxu0 %v305
        %v494 = vpop.f32.mrb[0].mxu0
        %v495 = vadd.f32 0.0, %v494
        %v496 = vpop.f32.mrb[0].mxu0
        %497 = vmatprep.mubr.f32.mxu0 0.0
        %498 = vmatmul.mubr.f32.gmra.mrb[0].mxu0 %v308
        %v499 = vpop.f32.mrb[0].mxu0
        %v500 = vadd.f32 0.0, %v499
        %v501 = vpop.f32.mrb[0].mxu0
        %502 = vmatprep.mubr.f32.mxu0 0.0
        %503 = vmatmul.mubr.f32.gmra.mrb[0].mxu0 %v311
        %v504 = vpop.f32.mrb[0].mxu0
        %v505 = vadd.f32 0.0, %v504
        %v506 = vpop.f32.mrb[0].mxu0
        %507 = vmatprep.mubr.f32.mxu0 0.0
        %508 = vmatmul.mubr.f32.gmra.mrb[0].mxu0 %v314
        %v509 = vpop.f32.mrb[0].mxu0
        %v510 = vadd.f32 0.0, %v509
        %v511 = vpop.f32.mrb[0].mxu0
        %512 = vmatprep.mubr.f32.mxu0 0.0
        %513 = vmatmul.mubr.f32.gmra.mrb[0].mxu0 %v317
        %v514 = vpop.f32.mrb[0].mxu0
        %v515 = vadd.f32 0.0, %v514
        %v516 = vpop.f32.mrb[0].mxu0
        %517 = vmatprep.mubr.f32.mxu0 0.0
        %518 = vmatmul.mubr.f32.gmra.mrb[0].mxu0 %v320
        %v519 = vpop.f32.mrb[0].mxu0
        %v520 = vadd.f32 0.0, %v519
        %v521 = vpop.f32.mrb[0].mxu0
        %522 = vmatprep.mubr.f32.mxu0 0.0
        %523 = vmatmul.mubr.f32.gmra.mrb[0].mxu0 %v323
        %v524 = vpop.f32.mrb[0].mxu0
        %v525 = vadd.f32 0.0, %v524
        %v526 = vpop.f32.mrb[0].mxu0
        %527 = vmatprep.mubr.f32.mxu0 0.0
        %528 = vmatmul.mubr.f32.gmra.mrb[0].mxu0 %v326
        %v529 = vpop.f32.mrb[0].mxu0
        %v530 = vadd.f32 0.0, %v529
        %v531 = vpop.f32.mrb[0].mxu0
        %532 = vmatprep.mubr.f32.mxu0 0.0
        %533 = vmatmul.mubr.f32.gmra.mrb[0].mxu0 %v329
        %v534 = vpop.f32.mrb[0].mxu0
        %v535 = vadd.f32 0.0, %v534
        %v536 = vpop.f32.mrb[0].mxu0
        %537 = vmatprep.mubr.f32.mxu0 0.0
        %538 = vmatmul.mubr.f32.gmra.mrb[0].mxu0 %v332
        %v539 = vpop.f32.mrb[0].mxu0
        %v540 = vadd.f32 0.0, %v539
        %v541 = vpop.f32.mrb[0].mxu0
        %542 = vmatprep.mubr.f32.mxu0 0.0
        %543 = vmatmul.mubr.f32.gmra.mrb[0].mxu0 %v335
        %v544 = vpop.f32.mrb[0].mxu0
        %v545 = vadd.f32 0.0, %v544
        %v546 = vpop.f32.mrb[0].mxu0
        %547 = vmatprep.mubr.f32.mxu0 0.0
        %548 = vmatmul.mubr.f32.gmra.mrb[0].mxu0 %v338
        %v549 = vpop.f32.mrb[0].mxu0
        %v550 = vadd.f32 0.0, %v549
        %v551 = vpop.f32.mrb[0].mxu0
        %552 = vmatprep.mubr.f32.mxu0 0.0
        %553 = vmatmul.mubr.f32.gmra.mrb[0].mxu0 %v341
        %v554 = vpop.f32.mrb[0].mxu0
        %v555 = vadd.f32 0.0, %v554
        %v556 = vpop.f32.mrb[0].mxu0
        %557 = vmatprep.mubr.f32.mxu0 0.0
        %558 = vmatmul.mubr.f32.gmra.mrb[0].mxu0 %v344
        %v559 = vpop.f32.mrb[0].mxu0
        %v560 = vadd.f32 0.0, %v559
        %v561 = vpop.f32.mrb[0].mxu0
        %562 = vmatprep.mubr.f32.mxu0 0.0
        %563 = vmatmul.mubr.f32.gmra.mrb[0].mxu0 %v347
        %v564 = vpop.f32.mrb[0].mxu0
        %v565 = vadd.f32 0.0, %v564
        %v566 = vpop.f32.mrb[0].mxu0
        %567 = vmatprep.mubr.f32.mxu0 0.0
        %568 = vmatmul.mubr.f32.gmra.mrb[0].mxu0 %v350
        %v569 = vpop.f32.mrb[0].mxu0
        %v570 = vadd.f32 0.0, %v569
        %v571 = vpop.f32.mrb[0].mxu0
        %572 = vmatprep.mubr.f32.mxu0 0.0
        %573 = vmatmul.mubr.f32.gmra.mrb[0].mxu0 %v353
        %v574 = vpop.f32.mrb[0].mxu0
        %v575 = vadd.f32 0.0, %v574
        %v576 = vpop.f32.mrb[0].mxu0
        %577 = vmatprep.mubr.f32.mxu0 0.0
        %578 = vmatmul.mubr.f32.gmra.mrb[0].mxu0 %v356
        %v579 = vpop.f32.mrb[0].mxu0
        %v580 = vadd.f32 0.0, %v579
        %v581 = vpop.f32.mrb[0].mxu0
        %582 = vmatprep.mubr.f32.mxu0 0.0
        %583 = vmatmul.mubr.f32.gmra.mrb[0].mxu0 %v359
        %v584 = vpop.f32.mrb[0].mxu0
        %v585 = vadd.f32 0.0, %v584
        %v586 = vpop.f32.mrb[0].mxu0
        %587 = vmatprep.mubr.f32.mxu0 0.0
        %588 = vmatmul.mubr.f32.gmra.mrb[0].mxu0 %v362
        %v589 = vpop.f32.mrb[0].mxu0
        %v590 = vadd.f32 0.0, %v589
        %v591 = vpop.f32.mrb[0].mxu0
        %592 = vmatprep.mubr.f32.mxu0 0.0
        %593 = vmatmul.mubr.f32.gmra.mrb[0].mxu0 %v365
        %v594 = vpop.f32.mrb[0].mxu0
        %v595 = vadd.f32 0.0, %v594
        %v596 = vpop.f32.mrb[0].mxu0
        %597 = vdwg.mxu0
        %598 = vxpose.xlu0.b32.start [1/16] %v440, 128
        %599 = vxpose.xlu0.b32.cont [2/16] %v445, 128
        %600 = vxpose.xlu0.b32.cont [3/16] %v450, 128
        %601 = vxpose.xlu0.b32.cont [4/16] %v455, 128
        %602 = vxpose.xlu0.b32.cont [5/16] %v460, 128
        %603 = vxpose.xlu0.b32.cont [6/16] %v465, 128
        %604 = vxpose.xlu0.b32.cont [7/16] %v470, 128
        %605 = vxpose.xlu0.b32.cont [8/16] %v475, 128
        %606 = vxpose.xlu0.b32.cont [9/16] %v480, 128
        %607 = vxpose.xlu0.b32.cont [10/16] %v485, 128
        %608 = vxpose.xlu0.b32.cont [11/16] %v490, 128
        %609 = vxpose.xlu0.b32.cont [12/16] %v495, 128
        %610 = vxpose.xlu0.b32.cont [13/16] %v500, 128
        %611 = vxpose.xlu0.b32.cont [14/16] %v505, 128
        %612 = vxpose.xlu0.b32.cont [15/16] %v510, 128
        %613 = vxpose.xlu0.b32.end [16/16] %v515, 128
        %v614 = vpop.trf.xlu0
        %v615 = vpop.trf.xlu0
        %v616 = vpop.trf.xlu0
        %v617 = vpop.trf.xlu0
        %v618 = vpop.trf.xlu0
        %v619 = vpop.trf.xlu0
        %v620 = vpop.trf.xlu0
        %v621 = vpop.trf.xlu0
        %v622 = vpop.trf.xlu0
        %v623 = vpop.trf.xlu0
        %v624 = vpop.trf.xlu0
        %v625 = vpop.trf.xlu0
        %v626 = vpop.trf.xlu0
        %v627 = vpop.trf.xlu0
        %v628 = vpop.trf.xlu0
        %v629 = vpop.trf.xlu0
        %630 = vxpose.xlu0.b32.start [1/16] %v520, 128
        %631 = vxpose.xlu0.b32.cont [2/16] %v525, 128
        %632 = vxpose.xlu0.b32.cont [3/16] %v530, 128
        %633 = vxpose.xlu0.b32.cont [4/16] %v535, 128
        %634 = vxpose.xlu0.b32.cont [5/16] %v540, 128
        %635 = vxpose.xlu0.b32.cont [6/16] %v545, 128
        %636 = vxpose.xlu0.b32.cont [7/16] %v550, 128
        %637 = vxpose.xlu0.b32.cont [8/16] %v555, 128
        %638 = vxpose.xlu0.b32.cont [9/16] %v560, 128
        %639 = vxpose.xlu0.b32.cont [10/16] %v565, 128
        %640 = vxpose.xlu0.b32.cont [11/16] %v570, 128
        %641 = vxpose.xlu0.b32.cont [12/16] %v575, 128
        %642 = vxpose.xlu0.b32.cont [13/16] %v580, 128
        %643 = vxpose.xlu0.b32.cont [14/16] %v585, 128
        %644 = vxpose.xlu0.b32.cont [15/16] %v590, 128
        %645 = vxpose.xlu0.b32.end [16/16] %v595, 128
        %v646 = vpop.trf.xlu0
        %v647 = vpop.trf.xlu0
        %v648 = vpop.trf.xlu0
        %v649 = vpop.trf.xlu0
        %v650 = vpop.trf.xlu0
        %v651 = vpop.trf.xlu0
        %v652 = vpop.trf.xlu0
        %v653 = vpop.trf.xlu0
        %v654 = vpop.trf.xlu0
        %v655 = vpop.trf.xlu0
        %v656 = vpop.trf.xlu0
        %v657 = vpop.trf.xlu0
        %v658 = vpop.trf.xlu0
        %v659 = vpop.trf.xlu0
        %v660 = vpop.trf.xlu0
        %v661 = vpop.trf.xlu0
        %v662 = vld [vmem:[%s2] sm:$0xff]
        %v663 = vld [vmem:[%s2 + $0x8] sm:$0xff]
        %665 = vset.pattern.permute.xlu0 0
        %666 = vperm.xlu0 %665, %v662
        %v667 = vpop.permute.xlu0 %666
        %670 = vset.pattern.permute.xlu0 0
        %671 = vperm.xlu0 %670, %v663
        %v672 = vpop.permute.xlu0 %671
        %v674 = vadd.f32 %v614, %v667
        %v675 = vadd.f32 %v646, %v667
        %v676 = vadd.f32 %v615, %v672
        %v677 = vadd.f32 %v647, %v672
        %v678 = vmax.f32 %v674, 0.0
        %v679 = vmax.f32 %v675, 0.0
        %v680 = vmax.f32 %v676, 0.0
        %v681 = vmax.f32 %v677, 0.0
        %682 = vst [vmem:[%s188] sm:$0xff] %v678
        %683 = vst [vmem:[%s188 + $0x8] sm:$0xff] %v679
        %684 = vst [vmem:[%s188 + $0x10] sm:$0xff] %v680
        %685 = vst [vmem:[%s188 + $0x18] sm:$0xff] %v681
        %s686 = sand.u32 %s109, 1
        %s687 = scalar_lea.sflag [#allocation3], %s686
        %s688 = sand.u32 %s109, 1
        %s689 = smul.addr %s688, 32
        %s690 = scalar_lea.vmem [#allocation2], %s689
        // Predicated region
        $region33: #{tpu_custom_call.1} parent=31 // pred_check
          %p691 = pneg %p119
        $region34: #{tpu_custom_call.1} parent=31 // pred_check_branch
          %693 = sbr.rel (%p691) target = $region36
        $region35: #{tpu_custom_call.1} parent=31 // pred_region
          %s694 = smul.u32 2, %s22
          %s696 = ssub.s32 512, 512
          %697 = vsyncadd %s687, %s696
          %s698 = smul.addr %s21, 4
          %s699 = sadd.s32 %s694, %s698
          %s700 = smul.addr %s699, 128
          %s701 = scalar_lea.hbm %s3, %s700
          %s702 = sshll.u32 %s690, 4
          %s703 = int_to_ptr.vmem [resolvable:$true] %s702
          %708 = dma.vmem_to_hbm [thread:$0]  %s703, 512, %s701, %s687, 256, 256, 16
        $region36: #{tpu_custom_call.1} parent=31 // pred_fallthru
          _
      $region32: #{tpu_custom_call.1} parent=5 // pred_fallthru
        _
      %p709 = scmp.le.s32.totalorder 2, %s12
      // Predicated region
      $region37: #{tpu_custom_call.1} parent=5 // pred_check
        %p710 = pneg %p709
      $region38: #{tpu_custom_call.1} parent=5 // pred_check_branch
        %712 = sbr.rel (%p710) target = $region40
      $region39: #{tpu_custom_call.1} parent=5 // pred_region
        %s713 = ssub.s32 %s12, 2
        // Predicated region
        $region41: #{tpu_custom_call.1} parent=39 // pred_check
          %p714 = pneg %p125
        $region42: #{tpu_custom_call.1} parent=39 // pred_check_branch
          %716 = sbr.rel (%p714) target = $region44
        $region43: #{tpu_custom_call.1} parent=39 // pred_region
          %s717 = sand.u32 %s110, 1
          %s718 = scalar_lea.sflag [#allocation3], %s717
          %s719 = sand.u32 %s110, 1
          %s720 = smul.addr %s719, 32
          %s721 = scalar_lea.vmem [#allocation2], %s720
          %722 = dma.done %s718, 512
        $region44: #{tpu_custom_call.1} parent=39 // pred_fallthru
          _
      $region40: #{tpu_custom_call.1} parent=5 // pred_fallthru
        _
    $region6: #{tpu_custom_call.1} parent=1 // loop_footer
      %s16 = sadd.s32 1, %s12
    $region7: #{tpu_custom_call.1} parent=1 // loop_footer_branch
      %11 = sbr.rel target = $region3
    $region8: #{tpu_custom_call.1} parent=1 // loop_exit
      _
    %723 = vsyncpa [#allocation3], 1
    %s724 = scalar_lea.sflag [#allocation3], 1
    %725 = vsyncpa %s724, 1

</llo_original>
